<compile_context>
chip_gen: v7x
topology: tpu7x:2x2x1
jax: 0.10.0
libtpu: 0.0.40
codegen_flags: <defaults>
</compile_context>

<pallas_src>
import functools

import jax
import jax.numpy as jnp
from jax.experimental import pallas as pl
from jax.experimental.pallas import tpu as pltpu


_BLOCK_BYTES = 2 * 1024 * 1024       # per (1, TC, TL) block; ~4 live per kernel
_VMEM_LIMIT = 32 * 1024 * 1024       # explicit scoped-VMEM limit (safe on v5e/v6e/v7x)


def _pick_tile(n, quantum, max_tile):
    """Largest divisor of n that is a multiple of `quantum` and <= max_tile.

    Falls back to n (full extent) when n is not a multiple of `quantum`; a
    full-extent block needs no (8, 128) alignment, which keeps small / odd
    dims (like the C=4, L=16 test shape) legal.
    """
    if n % quantum != 0:
        return n
    t = (min(n, max(quantum, max_tile)) // quantum) * quantum
    while t >= quantum:
        if n % t == 0:
            return t
        t -= quantum
    return n


def _fms_pool_kernel(x_ref, m_ref, *, inv_l):
    # x_ref: (1, TC, TL); m_ref: (1, TC, 1) f32 output, resident across the L axis.
    li = pl.program_id(2)

    @pl.when(li == 0)
    def _init():
        m_ref[...] = jnp.zeros_like(m_ref)

    # Accumulate the lane-axis partial sum in f32 (safe if x is ever bf16).
    m_ref[...] += jnp.sum(x_ref[...].astype(jnp.float32), axis=-1, keepdims=True)

    @pl.when(li == pl.num_programs(2) - 1)
    def _finalize():
        m_ref[...] = m_ref[...] * inv_l


def _fms_apply_kernel(x_ref, y_ref, o_ref):
    # x_ref / o_ref: (1, TC, TL);  y_ref: (1, TC, 1) already cast to x's dtype.
    x = x_ref[...]
    y = y_ref[...]                 # one broadcast over the lane axis per tile
    o_ref[...] = x * y + y


@jax.jit
def fms_block(x, w, b):
    """x: (B, C, L); w: (C, C) (PyTorch nn.Linear weight); b: (C,)."""
    B, C, L = x.shape
    itemsize = jnp.dtype(x.dtype).itemsize

    # Lane-dense L tile first (multiple of 128 when possible), then fill the
    # per-block byte budget with the channel tile (multiple of 8 when possible).
    tl = _pick_tile(L, 128, max(128, _BLOCK_BYTES // (8 * itemsize)))
    tc = _pick_tile(C, 8, max(8, _BLOCK_BYTES // (tl * itemsize)))
    grid = (B, C // tc, L // tl)

    x_spec = pl.BlockSpec((1, tc, tl), lambda bi, ci, li: (bi, ci, li))
    yc_spec = pl.BlockSpec((1, tc, 1), lambda bi, ci, li: (bi, ci, 0))

    # --- 1) adaptive avg pool: mean over L (Pallas reduction, f32 accumulate).
    pooled = pl.pallas_call(
        functools.partial(_fms_pool_kernel, inv_l=1.0 / L),
        out_shape=jax.ShapeDtypeStruct((B, C, 1), jnp.float32),
        grid_spec=pltpu.PrefetchScalarGridSpec(
            num_scalar_prefetch=0,
            grid=grid,
            in_specs=[x_spec],
            out_specs=yc_spec),
        compiler_params=pltpu.CompilerParams(
            dimension_semantics=("parallel", "parallel", "arbitrary"),
            vmem_limit_bytes=_VMEM_LIMIT),
    )(x)

    # --- 2) fc_attention + sigmoid: one batched (B, C) @ (C, C) matmul in XLA.
    #        Keeps the (C, C) weight out of the Pallas pipeline (no 2x C^2 VMEM
    #        double-buffering) and feeds the MXU M=B rows instead of M=1.
    m = pooled[:, :, 0]                                            # (B, C) f32
    y = jax.nn.sigmoid(
        jnp.dot(m, w.T, preferred_element_type=jnp.float32)
        + b.astype(jnp.float32))
    y = y.astype(x.dtype)[:, :, None]                              # (B, C, 1)

    # --- 3) out = x * y + y, lane-dense tiles, fully parallel grid
    #        (>=2 independent iterations for v7x's two TensorCores when B>=2
    #        or L/C tile).
    return pl.pallas_call(
        _fms_apply_kernel,
        out_shape=jax.ShapeDtypeStruct((B, C, L), x.dtype),
        grid_spec=pltpu.PrefetchScalarGridSpec(
            num_scalar_prefetch=0,
            grid=grid,
            in_specs=[x_spec, yc_spec],
            out_specs=x_spec),
        compiler_params=pltpu.CompilerParams(
            dimension_semantics=("parallel", "parallel", "parallel"),
            vmem_limit_bytes=_VMEM_LIMIT),
    )(x, y)


def fms_block_ref(x, w, b):
    """Pure-JAX reference matching the PyTorch forward exactly."""
    m = jnp.mean(x, axis=-1)                          # (B, C)
    y = jax.nn.sigmoid(m @ w.T + b)[:, :, None]       # (B, C, 1)
    return x * y + y


if __name__ == "__main__":
    key = jax.random.PRNGKey(0)
    kx, kw, kb = jax.random.split(key, 3)

    B, C, L = 2, 4, 16
    x = jax.random.normal(kx, (B, C, L), dtype=jnp.float32)
    # deterministic synthetic parameters for nn.Linear(C, C)
    w = jax.random.normal(kw, (C, C), dtype=jnp.float32) * (1.0 / jnp.sqrt(C))
    b = jax.random.normal(kb, (C,), dtype=jnp.float32) * 0.1

    out = jax.block_until_ready(fms_block(x, w, b))
    ref = fms_block_ref(x, w, b)

    assert out.shape == (B, C, L)
    assert jnp.allclose(out, ref, atol=1e-5, rtol=1e-5)

    print("KERNEL_OK")
</pallas_src>

<mosaic_0001>
module attributes {stable_mosaic.version = 11 : i64} {
  func.func @_fms_pool_kernel(%arg0: i32, %arg1: i32, %arg2: i32, %arg3: memref<1x4x16xf32, #tpu.memory_space<vmem>>, %arg4: memref<1x4x1xf32, #tpu.memory_space<vmem>>) attributes {dimension_semantics = [#tpu.dimension_semantics<parallel>, #tpu.dimension_semantics<parallel>, #tpu.dimension_semantics<arbitrary>], iteration_bounds = array<i64: 2, 1, 1>, scalar_prefetch = 0 : i64, scratch_operands = 0 : i64, tpu.core_type = #tpu.core_type<tc>, window_params = [{transform_indices = @transform_0, window_bounds = array<i64: 1, 4, 16>}, {transform_indices = @transform_1, window_bounds = array<i64: 1, 4, 1>}]} {
    %c0_i32 = arith.constant 0 : i32
    %0 = arith.cmpi eq, %arg2, %c0_i32 : i32
    %1 = arith.extui %0 : i1 to i32
    %c0_i32_0 = arith.constant 0 : i32
    %2 = arith.cmpi ne, %1, %c0_i32_0 : i32
    scf.if %2 {
      %cst_11 = arith.constant 0.000000e+00 : f32
      %12 = vector.broadcast %cst_11 : f32 to vector<1x4x1xf32>
      %c0_12 = arith.constant 0 : index
      %c0_13 = arith.constant 0 : index
      %c0_14 = arith.constant 0 : index
      %13 = vector.load %arg4[%c0_12, %c0_13, %c0_14] : memref<1x4x1xf32, #tpu.memory_space<vmem>>, vector<1x4x1xf32>
      tpu.vector_store %arg4[%c0_12, %c0_13, %c0_14], %12 {strides = array<i32>} : memref<1x4x1xf32, #tpu.memory_space<vmem>>, vector<1x4x1xf32>,
    } else {
    }
    %c0 = arith.constant 0 : index
    %c0_1 = arith.constant 0 : index
    %c0_2 = arith.constant 0 : index
    %3 = vector.load %arg4[%c0, %c0_1, %c0_2] : memref<1x4x1xf32, #tpu.memory_space<vmem>>, vector<1x4x1xf32>
    %c0_3 = arith.constant 0 : index
    %c0_4 = arith.constant 0 : index
    %c0_5 = arith.constant 0 : index
    %4 = vector.load %arg3[%c0_3, %c0_4, %c0_5] : memref<1x4x16xf32, #tpu.memory_space<vmem>>, vector<1x4x16xf32>
    %cst = arith.constant dense<0.000000e+00> : vector<1x4xf32>
    %5 = vector.multi_reduction <add>, %4, %cst [2] : vector<1x4x16xf32> to vector<1x4xf32>
    %6 = vector.shape_cast %5 : vector<1x4xf32> to vector<1x4x1xf32>
    %7 = arith.addf %3, %6 : vector<1x4x1xf32>
    %c0_6 = arith.constant 0 : index
    %c0_7 = arith.constant 0 : index
    %c0_8 = arith.constant 0 : index
    %8 = vector.load %arg4[%c0_6, %c0_7, %c0_8] : memref<1x4x1xf32, #tpu.memory_space<vmem>>, vector<1x4x1xf32>
    tpu.vector_store %arg4[%c0_6, %c0_7, %c0_8], %7 {strides = array<i32>} : memref<1x4x1xf32, #tpu.memory_space<vmem>>, vector<1x4x1xf32>,
    %c0_i32_9 = arith.constant 0 : i32
    %9 = arith.cmpi eq, %arg2, %c0_i32_9 : i32
    %10 = arith.extui %9 : i1 to i32
    %c0_i32_10 = arith.constant 0 : i32
    %11 = arith.cmpi ne, %10, %c0_i32_10 : i32
    scf.if %11 {
      %c0_11 = arith.constant 0 : index
      %c0_12 = arith.constant 0 : index
      %c0_13 = arith.constant 0 : index
      %12 = vector.load %arg4[%c0_11, %c0_12, %c0_13] : memref<1x4x1xf32, #tpu.memory_space<vmem>>, vector<1x4x1xf32>
      %cst_14 = arith.constant 6.250000e-02 : f32
      %13 = vector.broadcast %cst_14 : f32 to vector<1x4x1xf32>
      %14 = arith.mulf %12, %13 : vector<1x4x1xf32>
      %c0_15 = arith.constant 0 : index
      %c0_16 = arith.constant 0 : index
      %c0_17 = arith.constant 0 : index
      %15 = vector.load %arg4[%c0_15, %c0_16, %c0_17] : memref<1x4x1xf32, #tpu.memory_space<vmem>>, vector<1x4x1xf32>
      tpu.vector_store %arg4[%c0_15, %c0_16, %c0_17], %14 {strides = array<i32>} : memref<1x4x1xf32, #tpu.memory_space<vmem>>, vector<1x4x1xf32>,
    } else {
    }
    return
  }
  func.func @transform_0(%arg0: i32, %arg1: i32, %arg2: i32) -> (i32, i32, i32) {
    %c0_i32 = arith.constant 0 : i32
    return %arg0, %arg1, %arg2 : i32, i32, i32
  }
  func.func @transform_1(%arg0: i32, %arg1: i32, %arg2: i32) -> (i32, i32, i32) {
    %c0_i32 = arith.constant 0 : i32
    %c0_i32_0 = arith.constant 0 : i32
    return %arg0, %arg1, %c0_i32 : i32, i32, i32
  }
}

module attributes {stable_mosaic.version = 11 : i64} {
  func.func @_fms_apply_kernel(%arg0: i32, %arg1: i32, %arg2: i32, %arg3: memref<1x4x16xf32, #tpu.memory_space<vmem>>, %arg4: memref<1x4x1xf32, #tpu.memory_space<vmem>>, %arg5: memref<1x4x16xf32, #tpu.memory_space<vmem>>) attributes {dimension_semantics = [#tpu.dimension_semantics<parallel>, #tpu.dimension_semantics<parallel>, #tpu.dimension_semantics<parallel>], iteration_bounds = array<i64: 2, 1, 1>, scalar_prefetch = 0 : i64, scratch_operands = 0 : i64, tpu.core_type = #tpu.core_type<tc>, window_params = [{transform_indices = @transform_0, window_bounds = array<i64: 1, 4, 16>}, {transform_indices = @transform_1, window_bounds = array<i64: 1, 4, 1>}, {transform_indices = @transform_2, window_bounds = array<i64: 1, 4, 16>}]} {
    %c0 = arith.constant 0 : index
    %c0_0 = arith.constant 0 : index
    %c0_1 = arith.constant 0 : index
    %0 = vector.load %arg3[%c0, %c0_0, %c0_1] : memref<1x4x16xf32, #tpu.memory_space<vmem>>, vector<1x4x16xf32>
    %c0_2 = arith.constant 0 : index
    %c0_3 = arith.constant 0 : index
    %c0_4 = arith.constant 0 : index
    %1 = vector.load %arg4[%c0_2, %c0_3, %c0_4] : memref<1x4x1xf32, #tpu.memory_space<vmem>>, vector<1x4x1xf32>
    %2 = vector.broadcast %1 : vector<1x4x1xf32> to vector<1x4x16xf32>
    %3 = arith.mulf %0, %2 : vector<1x4x16xf32>
    %4 = vector.broadcast %1 : vector<1x4x1xf32> to vector<1x4x16xf32>
    %5 = arith.addf %3, %4 : vector<1x4x16xf32>
    %c0_5 = arith.constant 0 : index
    %c0_6 = arith.constant 0 : index
    %c0_7 = arith.constant 0 : index
    %6 = vector.load %arg5[%c0_5, %c0_6, %c0_7] : memref<1x4x16xf32, #tpu.memory_space<vmem>>, vector<1x4x16xf32>
    tpu.vector_store %arg5[%c0_5, %c0_6, %c0_7], %5 {strides = array<i32>} : memref<1x4x16xf32, #tpu.memory_space<vmem>>, vector<1x4x16xf32>,
    return
  }
  func.func @transform_0(%arg0: i32, %arg1: i32, %arg2: i32) -> (i32, i32, i32) {
    %c0_i32 = arith.constant 0 : i32
    return %arg0, %arg1, %arg2 : i32, i32, i32
  }
  func.func @transform_1(%arg0: i32, %arg1: i32, %arg2: i32) -> (i32, i32, i32) {
    %c0_i32 = arith.constant 0 : i32
    %c0_i32_0 = arith.constant 0 : i32
    return %arg0, %arg1, %c0_i32 : i32, i32, i32
  }
  func.func @transform_2(%arg0: i32, %arg1: i32, %arg2: i32) -> (i32, i32, i32) {
    %c0_i32 = arith.constant 0 : i32
    return %arg0, %arg1, %arg2 : i32, i32, i32
  }
}

</mosaic_0001>

<llo_original>
// kernel: fms_block.2
$region0: #{fms_block.2}
  #allocation0 [shape = 'u32[]', space=smem, size = 0x4, offset = 0x4, fixed_abs, tag = 'smem constant byte address 0x4 - core index']
  #allocation1 [shape = 'u32[144,128]{1,0:T(1,128)}', space=vmem, size = 0x12000, scoped, tag = 'internal scratch']
  %s0 = inlined_call_operand.hbm [shape: f32[2,4,16], index: 0, kind: input, shape index: {}]
  %s1 = inlined_call_operand.vmem [shape: f32[2,4,1], index: 1, kind: output, shape index: {}]
  %s2 = sld [smem:[#allocation0]]
  $region49: #{fms_block.2} parent=0
    _
  %s4 = ssub.s32 1, %s2
  %s5 = scalar_select 0, %s4, %s2
  $region1: #{fms_block.2} parent=0
    #allocation2 [shape = 'u8[4096]{0}', space=vmem, size = 0x1000, scoped, tag = 'input window, operand 0']
    #allocation3 [shape = 's32[2]{0}', space=sflag, size = 0x8, scoped, tag = 'scoped memory for fms_block.2']
    %6 = vsyncpa [#allocation3], 0
    %s7 = scalar_lea.sflag [#allocation3], 1
    %8 = vsyncpa %s7, 0
    loop: start=0, step=1, limit=4
    $region2: #{fms_block.2} parent=1 // loop_pre_header
      _
    $region3: #{fms_block.2} parent=1 // loop_header
      %s10 = sphi 0, %s14
      %p11 = scmp.ge.s32.totalorder %s10, 4
      %s17 = sphi 0, %s36
      %s18 = sphi 0, %s32
      %s19 = sphi 0, %s28
      %s20 = sphi 0, %s17
      %s21 = sphi 0, %s18
      %s22 = sphi 0, %s19
      %s23 = sphi 0, %s20
      %s24 = sphi 0, %s21
      %s25 = sphi 0, %s22
      %s43 = sphi 0, %s45
      %s46 = sphi 0, %s43
      %s47 = sphi 0, %s46
      %s63 = sphi 0, %s47
      %s71 = sphi 0, %s73
      %s74 = sphi 0, %s71
      %s75 = sphi 0, %s74
      %s91 = sphi 0, %s75
    $region4: #{fms_block.2} parent=1 // loop_header_branch
      %13 = sbr.rel (%p11) target = $region8
    $region5: #{fms_block.2} parent=1 // loop_body
      %s15 = ssub.s32 %s10, 1
      %s16 = ssub.s32 %s10, 2
      %s26 = sadd.s32 1, %s19
      %p27 = scmp.ge.s32.totalorder %s26, 1
      %s28 = scalar_select %p27, 0, %s26
      %s29 = sadd.s32 1, %s18
      %s30 = scalar_select %p27, %s29, %s18
      %p31 = scmp.ge.s32.totalorder %s30, 1
      %s32 = scalar_select %p31, 0, %s30
      %s33 = sadd.s32 1, %s17
      %s34 = scalar_select %p31, %s33, %s17
      %p35 = scmp.ge.s32.totalorder %s34, 2
      %s36 = scalar_select %p35, 0, %s34
      %s37 = ssub.s32 %s17, %s36
      %s38 = ssub.s32 %s18, %s32
      %s39 = sor.u32 %s37, %s38
      %s40 = ssub.s32 %s19, %s28
      %s41 = sor.u32 %s39, %s40
      %p42 = scmp.eq.s32.totalorder %s41, 0
      %s44 = sadd.s32 %s43, 1
      %s45 = scalar_select %p42, %s43, %s44
      %p48 = pneg %p42
      %p49 = scmp.eq.s32.totalorder %s10, 1
      %p50 = por %p48, %p49
      %p51 = scmp.ne.s32.totalorder %s43, %s46
      %p52 = scmp.eq.s32.totalorder %s10, 0
      %p53 = por %p51, %p52
      %p54 = scmp.ne.s32.totalorder %s43, %s46
      %p55 = scmp.eq.s32.totalorder %s15, 1
      %p56 = por %p54, %p55
      %p57 = scmp.ne.s32.totalorder %s46, %s47
      %p58 = scmp.eq.s32.totalorder %s15, 0
      %p59 = por %p57, %p58
      %p60 = scmp.ne.s32.totalorder %s46, %s47
      %p61 = scmp.eq.s32.totalorder %s16, 1
      %p62 = por %p60, %p61
      %p64 = scmp.ne.s32.totalorder %s47, %s63
      %p65 = scmp.eq.s32.totalorder %s16, 0
      %p66 = por %p64, %p65
      %s67 = ssub.s32 %s17, %s36
      %s68 = ssub.s32 %s18, %s32
      %s69 = sor.u32 %s67, %s68
      %p70 = scmp.eq.s32.totalorder %s69, 0
      %s72 = sadd.s32 %s71, 1
      %s73 = scalar_select %p70, %s71, %s72
      %p76 = pneg %p70
      %p77 = scmp.eq.s32.totalorder %s10, 1
      %p78 = por %p76, %p77
      %p79 = scmp.ne.s32.totalorder %s71, %s74
      %p80 = scmp.eq.s32.totalorder %s10, 0
      %p81 = por %p79, %p80
      %p82 = scmp.ne.s32.totalorder %s71, %s74
      %p83 = scmp.eq.s32.totalorder %s15, 1
      %p84 = por %p82, %p83
      %p85 = scmp.ne.s32.totalorder %s74, %s75
      %p86 = scmp.eq.s32.totalorder %s15, 0
      %p87 = por %p85, %p86
      %p88 = scmp.ne.s32.totalorder %s74, %s75
      %p89 = scmp.eq.s32.totalorder %s16, 1
      %p90 = por %p88, %p89
      %p92 = scmp.ne.s32.totalorder %s75, %s91
      %p93 = scmp.eq.s32.totalorder %s16, 0
      %p94 = por %p92, %p93
      %p95 = scmp.le.s32.totalorder 1, %s10
      %p96 = scmp.lt.s32.totalorder %s10, 3
      %p97 = pnand %p95, %p96
      %p98 = pneg %p97
      // Predicated region
      $region9: #{fms_block.2} parent=5 // pred_check
        _
      $region10: #{fms_block.2} parent=5 // pred_check_branch
        %100 = sbr.rel (%p97) target = $region12
      $region11: #{fms_block.2} parent=5 // pred_region
        %s101 = ssub.s32 %s10, 1
      $region12: #{fms_block.2} parent=5 // pred_fallthru
        _
      %p102 = scmp.lt.s32.totalorder %s10, 2
      // Predicated region
      $region13: #{fms_block.2} parent=5 // pred_check
        %p103 = pneg %p102
      $region14: #{fms_block.2} parent=5 // pred_check_branch
        %105 = sbr.rel (%p103) target = $region16
      $region15: #{fms_block.2} parent=5 // pred_region
        // Predicated region
        $region17: #{fms_block.2} parent=15 // pred_check
          %p106 = pneg %p53
        $region18: #{fms_block.2} parent=15 // pred_check_branch
          %108 = sbr.rel (%p106) target = $region20
        $region19: #{fms_block.2} parent=15 // pred_region
          %s109 = sand.u32 %s43, 1
          %s110 = scalar_lea.sflag [#allocation3], %s109
          %s111 = sand.u32 %s43, 1
          %s112 = smul.addr %s111, 4
          %s113 = scalar_lea.vmem [#allocation2], %s112
          %s115 = ssub.s32 64, 64
          %116 = vsyncadd %s110, %s115
          %s117 = sadd.s32 %s19, %s18
          %s118 = sadd.s32 %s117, %s17
          %s119 = smul.addr %s118, 64
          %s120 = scalar_lea.hbm %s0, %s119
          %s122 = sshll.u32 %s113, 4
          %s123 = int_to_ptr.vmem [resolvable:$true] %s122
          %125 = dma.hbm_to_vmem [thread:$0]  %s120, 64, %s123, %s110
        $region20: #{fms_block.2} parent=15 // pred_fallthru
          _
      $region16: #{fms_block.2} parent=5 // pred_fallthru
        _
      %p126 = scmp.le.s32.totalorder 1, %s10
      %p127 = scmp.lt.s32.totalorder %s10, 3
      %p128 = pnand %p126, %p127
      %p129 = pneg %p128
      // Predicated region
      $region21: #{fms_block.2} parent=5 // pred_check
        _
      $region22: #{fms_block.2} parent=5 // pred_check_branch
        %131 = sbr.rel (%p128) target = $region24
      $region23: #{fms_block.2} parent=5 // pred_region
        %s132 = ssub.s32 %s10, 1
        %s133 = sand.u32 %s46, 1
        %s134 = scalar_lea.sflag [#allocation3], %s133
        %s135 = sand.u32 %s46, 1
        %s136 = smul.addr %s135, 4
        %s137 = scalar_lea.vmem [#allocation2], %s136
        // Predicated region
        $region25: #{fms_block.2} parent=23 // pred_check
          %p138 = pneg %p59
        $region26: #{fms_block.2} parent=23 // pred_check_branch
          %140 = sbr.rel (%p138) target = $region28
        $region27: #{fms_block.2} parent=23 // pred_region
          %141 = dma.done %s134, 64
        $region28: #{fms_block.2} parent=23 // pred_fallthru
          _
        %s142 = sand.u32 %s46, 1
        %s143 = scalar_lea.sflag [#allocation3], %s142
        %s144 = sand.u32 %s46, 1
        %s145 = smul.addr %s144, 4
        %s146 = scalar_lea.vmem [#allocation2], %s145
        %p147 = pneg %p59
        %p148 = pneg %p56
        %p149 = pneg %p87
        %p150 = pneg %p84
        %p151 = scmp.lt.s32.totalorder %s20, 1
        %s152 = scalar_select %p151, %s20, 1
        %p153 = scmp.lt.s32.totalorder %s21, 0
        %s154 = scalar_select %p153, %s21, 0
        %s155 = sadd.s32 %s154, %s152
        %s156 = smul.addr %s155, 4
        %s157 = scalar_lea.vmem %s1, %s156
        %p158 = scmp.lt.s32.totalorder %s20, 1
        %s159 = scalar_select %p158, %s20, 1
        %p160 = scmp.lt.s32.totalorder %s21, 0
        %s161 = scalar_select %p160, %s21, 0
        %s162 = sadd.s32 %s161, %s159
        %s163 = smul.addr %s162, 4
        %s164 = scalar_lea.vmem %s1, %s163
        %p165 = scmp.eq.s32.totalorder %s22, 0
        // Predicated region
        $region29: #{fms_block.2} parent=23 // pred_check
          %p166 = pneg %p165
        $region30: #{fms_block.2} parent=23 // pred_check_branch
          %168 = sbr.rel (%p166) target = $region32
        $region31: #{fms_block.2} parent=23 // pred_region
          %vm169 = vcmask 3072
          %170 = vst.msk [vmem:[%s164] sm:$0xf] %vm169, 0.0
        $region32: #{fms_block.2} parent=23 // pred_fallthru
          _
        %v171 = vld [vmem:[%s164] sm:$0xf]
        %v172 = vld [vmem:[%s137] sm:$0xf]
        %vm173 = vcmask 125952
        %v174 = vsel %vm173, %v172, 0.0
        %175 = vadd.xlane.f32.xlu0 %v174
        %v176 = vpop.xlane.xlu0 %175
        %v177 = vadd.f32 %v171, %v176
        %vm178 = vcmask 3072
        %179 = vst.msk [vmem:[%s164] sm:$0xf] %vm178, %v177
        // Predicated region
        $region33: #{fms_block.2} parent=23 // pred_check
          %p180 = pneg %p165
        $region34: #{fms_block.2} parent=23 // pred_check_branch
          %182 = sbr.rel (%p180) target = $region36
        $region35: #{fms_block.2} parent=23 // pred_region
          %v183 = vld [vmem:[%s164] sm:$0xf]
          %v184 = vmul.f32 %v183, 0.0625
          %185 = vst.msk [vmem:[%s164] sm:$0xf] %vm178, %v184
        $region36: #{fms_block.2} parent=23 // pred_fallthru
          _
        %p186 = scmp.lt.s32.totalorder %s20, 1
        %s187 = scalar_select %p186, %s20, 1
        %p188 = scmp.lt.s32.totalorder %s21, 0
        %s189 = scalar_select %p188, %s21, 0
        %s190 = sadd.s32 %s189, %s187
        %s191 = smul.addr %s190, 4
        %s192 = scalar_lea.vmem %s1, %s191
        // Predicated region
        $region37: #{fms_block.2} parent=23 // pred_check
          %p193 = pneg %p84
        $region38: #{fms_block.2} parent=23 // pred_check_branch
          %195 = sbr.rel (%p193) target = $region40
        $region39: #{fms_block.2} parent=23 // pred_region
          _
        $region40: #{fms_block.2} parent=23 // pred_fallthru
          _
      $region24: #{fms_block.2} parent=5 // pred_fallthru
        _
      %p196 = scmp.le.s32.totalorder 2, %s10
      // Predicated region
      $region41: #{fms_block.2} parent=5 // pred_check
        %p197 = pneg %p196
      $region42: #{fms_block.2} parent=5 // pred_check_branch
        %199 = sbr.rel (%p197) target = $region44
      $region43: #{fms_block.2} parent=5 // pred_region
        %s200 = ssub.s32 %s10, 2
        // Predicated region
        $region45: #{fms_block.2} parent=43 // pred_check
          %p201 = pneg %p90
        $region46: #{fms_block.2} parent=43 // pred_check_branch
          %203 = sbr.rel (%p201) target = $region48
        $region47: #{fms_block.2} parent=43 // pred_region
          %p204 = scmp.lt.s32.totalorder %s23, 1
          %s205 = scalar_select %p204, %s23, 1
          %p206 = scmp.lt.s32.totalorder %s24, 0
          %s207 = scalar_select %p206, %s24, 0
          %s208 = sadd.s32 %s207, %s205
          %s209 = smul.addr %s208, 4
          %s210 = scalar_lea.vmem %s1, %s209
        $region48: #{fms_block.2} parent=43 // pred_fallthru
          _
      $region44: #{fms_block.2} parent=5 // pred_fallthru
        _
    $region6: #{fms_block.2} parent=1 // loop_footer
      %s14 = sadd.s32 1, %s10
    $region7: #{fms_block.2} parent=1 // loop_footer_branch
      %9 = sbr.rel target = $region3
    $region8: #{fms_block.2} parent=1 // loop_exit
      _
    %211 = vsyncpa [#allocation3], 1
    %s212 = scalar_lea.sflag [#allocation3], 1
    %213 = vsyncpa %s212, 1

// kernel: fms_block.3
$region0: #{fms_block.3}
  #allocation0 [shape = 'u32[]', space=smem, size = 0x4, offset = 0x4, fixed_abs, tag = 'smem constant byte address 0x4 - core index']
  #allocation1 [shape = 'u32[144,128]{1,0:T(1,128)}', space=vmem, size = 0x12000, scoped, tag = 'internal scratch']
  %s0 = inlined_call_operand.vmem [shape: f32[2,4,16], index: 0, kind: input, shape index: {}]
  %s1 = inlined_call_operand.vmem [shape: f32[2,4,1], index: 1, kind: input, shape index: {}]
  %s2 = inlined_call_operand.hbm [shape: f32[2,4,16], index: 2, kind: output, shape index: {}]
  %s3 = sld [smem:[#allocation0]]
  $region41: #{fms_block.3} parent=0
    _
  %s5 = ssub.s32 1, %s3
  %s6 = scalar_select 0, %s5, %s3
  $region1: #{fms_block.3} parent=0
    #allocation2 [shape = 'u8[4096]{0}', space=vmem, size = 0x1000, scoped, tag = 'output window, operand 0']
    #allocation3 [shape = 's32[2]{0}', space=sflag, size = 0x8, scoped, tag = 'scoped memory for fms_block.3']
    %7 = vsyncpa [#allocation3], 0
    %s8 = scalar_lea.sflag [#allocation3], 1
    %9 = vsyncpa %s8, 0
    loop: start=0, step=1, limit=4
    $region2: #{fms_block.3} parent=1 // loop_pre_header
      _
    $region3: #{fms_block.3} parent=1 // loop_header
      %s11 = sphi 0, %s15
      %p12 = scmp.ge.s32.totalorder %s11, 4
      %s18 = sphi 0, %s37
      %s19 = sphi 0, %s33
      %s20 = sphi 0, %s29
      %s21 = sphi 0, %s18
      %s22 = sphi 0, %s19
      %s23 = sphi 0, %s20
      %s24 = sphi 0, %s21
      %s25 = sphi 0, %s22
      %s26 = sphi 0, %s23
      %s44 = sphi 0, %s46
      %s47 = sphi 0, %s44
      %s48 = sphi 0, %s47
      %s64 = sphi 0, %s48
      %s72 = sphi 0, %s74
      %s75 = sphi 0, %s72
      %s76 = sphi 0, %s75
      %s92 = sphi 0, %s76
      %s102 = sphi 0, %s104
      %s105 = sphi 0, %s102
      %s106 = sphi 0, %s105
      %s122 = sphi 0, %s106
    $region4: #{fms_block.3} parent=1 // loop_header_branch
      %14 = sbr.rel (%p12) target = $region8
    $region5: #{fms_block.3} parent=1 // loop_body
      %s16 = ssub.s32 %s11, 1
      %s17 = ssub.s32 %s11, 2
      %s27 = sadd.s32 1, %s20
      %p28 = scmp.ge.s32.totalorder %s27, 1
      %s29 = scalar_select %p28, 0, %s27
      %s30 = sadd.s32 1, %s19
      %s31 = scalar_select %p28, %s30, %s19
      %p32 = scmp.ge.s32.totalorder %s31, 1
      %s33 = scalar_select %p32, 0, %s31
      %s34 = sadd.s32 1, %s18
      %s35 = scalar_select %p32, %s34, %s18
      %p36 = scmp.ge.s32.totalorder %s35, 2
      %s37 = scalar_select %p36, 0, %s35
      %s38 = ssub.s32 %s18, %s37
      %s39 = ssub.s32 %s19, %s33
      %s40 = sor.u32 %s38, %s39
      %s41 = ssub.s32 %s20, %s29
      %s42 = sor.u32 %s40, %s41
      %p43 = scmp.eq.s32.totalorder %s42, 0
      %s45 = sadd.s32 %s44, 1
      %s46 = scalar_select %p43, %s44, %s45
      %p49 = pneg %p43
      %p50 = scmp.eq.s32.totalorder %s11, 1
      %p51 = por %p49, %p50
      %p52 = scmp.ne.s32.totalorder %s44, %s47
      %p53 = scmp.eq.s32.totalorder %s11, 0
      %p54 = por %p52, %p53
      %p55 = scmp.ne.s32.totalorder %s44, %s47
      %p56 = scmp.eq.s32.totalorder %s16, 1
      %p57 = por %p55, %p56
      %p58 = scmp.ne.s32.totalorder %s47, %s48
      %p59 = scmp.eq.s32.totalorder %s16, 0
      %p60 = por %p58, %p59
      %p61 = scmp.ne.s32.totalorder %s47, %s48
      %p62 = scmp.eq.s32.totalorder %s17, 1
      %p63 = por %p61, %p62
      %p65 = scmp.ne.s32.totalorder %s48, %s64
      %p66 = scmp.eq.s32.totalorder %s17, 0
      %p67 = por %p65, %p66
      %s68 = ssub.s32 %s18, %s37
      %s69 = ssub.s32 %s19, %s33
      %s70 = sor.u32 %s68, %s69
      %p71 = scmp.eq.s32.totalorder %s70, 0
      %s73 = sadd.s32 %s72, 1
      %s74 = scalar_select %p71, %s72, %s73
      %p77 = pneg %p71
      %p78 = scmp.eq.s32.totalorder %s11, 1
      %p79 = por %p77, %p78
      %p80 = scmp.ne.s32.totalorder %s72, %s75
      %p81 = scmp.eq.s32.totalorder %s11, 0
      %p82 = por %p80, %p81
      %p83 = scmp.ne.s32.totalorder %s72, %s75
      %p84 = scmp.eq.s32.totalorder %s16, 1
      %p85 = por %p83, %p84
      %p86 = scmp.ne.s32.totalorder %s75, %s76
      %p87 = scmp.eq.s32.totalorder %s16, 0
      %p88 = por %p86, %p87
      %p89 = scmp.ne.s32.totalorder %s75, %s76
      %p90 = scmp.eq.s32.totalorder %s17, 1
      %p91 = por %p89, %p90
      %p93 = scmp.ne.s32.totalorder %s76, %s92
      %p94 = scmp.eq.s32.totalorder %s17, 0
      %p95 = por %p93, %p94
      %s96 = ssub.s32 %s18, %s37
      %s97 = ssub.s32 %s19, %s33
      %s98 = sor.u32 %s96, %s97
      %s99 = ssub.s32 %s20, %s29
      %s100 = sor.u32 %s98, %s99
      %p101 = scmp.eq.s32.totalorder %s100, 0
      %s103 = sadd.s32 %s102, 1
      %s104 = scalar_select %p101, %s102, %s103
      %p107 = pneg %p101
      %p108 = scmp.eq.s32.totalorder %s11, 1
      %p109 = por %p107, %p108
      %p110 = scmp.ne.s32.totalorder %s102, %s105
      %p111 = scmp.eq.s32.totalorder %s11, 0
      %p112 = por %p110, %p111
      %p113 = scmp.ne.s32.totalorder %s102, %s105
      %p114 = scmp.eq.s32.totalorder %s16, 1
      %p115 = por %p113, %p114
      %p116 = scmp.ne.s32.totalorder %s105, %s106
      %p117 = scmp.eq.s32.totalorder %s16, 0
      %p118 = por %p116, %p117
      %p119 = scmp.ne.s32.totalorder %s105, %s106
      %p120 = scmp.eq.s32.totalorder %s17, 1
      %p121 = por %p119, %p120
      %p123 = scmp.ne.s32.totalorder %s106, %s122
      %p124 = scmp.eq.s32.totalorder %s17, 0
      %p125 = por %p123, %p124
      %p126 = scmp.le.s32.totalorder 1, %s11
      %p127 = scmp.lt.s32.totalorder %s11, 3
      %p128 = pnand %p126, %p127
      %p129 = pneg %p128
      // Predicated region
      $region9: #{fms_block.3} parent=5 // pred_check
        _
      $region10: #{fms_block.3} parent=5 // pred_check_branch
        %131 = sbr.rel (%p128) target = $region12
      $region11: #{fms_block.3} parent=5 // pred_region
        %s132 = ssub.s32 %s11, 1
      $region12: #{fms_block.3} parent=5 // pred_fallthru
        _
      %p133 = scmp.lt.s32.totalorder %s11, 2
      // Predicated region
      $region13: #{fms_block.3} parent=5 // pred_check
        %p134 = pneg %p133
      $region14: #{fms_block.3} parent=5 // pred_check_branch
        %136 = sbr.rel (%p134) target = $region16
      $region15: #{fms_block.3} parent=5 // pred_region
        // Predicated region
        $region17: #{fms_block.3} parent=15 // pred_check
          %p137 = pneg %p54
        $region18: #{fms_block.3} parent=15 // pred_check_branch
          %139 = sbr.rel (%p137) target = $region20
        $region19: #{fms_block.3} parent=15 // pred_region
          %p140 = scmp.lt.s32.totalorder %s18, 1
          %s141 = scalar_select %p140, %s18, 1
          %p142 = scmp.lt.s32.totalorder %s19, 0
          %s143 = scalar_select %p142, %s19, 0
          %p144 = scmp.lt.s32.totalorder %s20, 0
          %s145 = scalar_select %p144, %s20, 0
          %s146 = sadd.s32 %s145, %s143
          %s147 = sadd.s32 %s146, %s141
          %s148 = smul.addr %s147, 4
          %s149 = scalar_lea.vmem %s0, %s148
        $region20: #{fms_block.3} parent=15 // pred_fallthru
          _
        // Predicated region
        $region21: #{fms_block.3} parent=15 // pred_check
          %p150 = pneg %p82
        $region22: #{fms_block.3} parent=15 // pred_check_branch
          %152 = sbr.rel (%p150) target = $region24
        $region23: #{fms_block.3} parent=15 // pred_region
          %p153 = scmp.lt.s32.totalorder %s18, 1
          %s154 = scalar_select %p153, %s18, 1
          %p155 = scmp.lt.s32.totalorder %s19, 0
          %s156 = scalar_select %p155, %s19, 0
          %s157 = sadd.s32 %s156, %s154
          %s158 = smul.addr %s157, 4
          %s159 = scalar_lea.vmem %s1, %s158
        $region24: #{fms_block.3} parent=15 // pred_fallthru
          _
      $region16: #{fms_block.3} parent=5 // pred_fallthru
        _
      %p160 = scmp.le.s32.totalorder 1, %s11
      %p161 = scmp.lt.s32.totalorder %s11, 3
      %p162 = pnand %p160, %p161
      %p163 = pneg %p162
      // Predicated region
      $region25: #{fms_block.3} parent=5 // pred_check
        _
      $region26: #{fms_block.3} parent=5 // pred_check_branch
        %165 = sbr.rel (%p162) target = $region28
      $region27: #{fms_block.3} parent=5 // pred_region
        %s166 = ssub.s32 %s11, 1
        %p167 = scmp.lt.s32.totalorder %s21, 1
        %s168 = scalar_select %p167, %s21, 1
        %p169 = scmp.lt.s32.totalorder %s22, 0
        %s170 = scalar_select %p169, %s22, 0
        %p171 = scmp.lt.s32.totalorder %s23, 0
        %s172 = scalar_select %p171, %s23, 0
        %s173 = sadd.s32 %s172, %s170
        %s174 = sadd.s32 %s173, %s168
        %s175 = smul.addr %s174, 4
        %s176 = scalar_lea.vmem %s0, %s175
        %p177 = pneg %p60
        %p178 = pneg %p57
        %p179 = scmp.lt.s32.totalorder %s21, 1
        %s180 = scalar_select %p179, %s21, 1
        %p181 = scmp.lt.s32.totalorder %s22, 0
        %s182 = scalar_select %p181, %s22, 0
        %s183 = sadd.s32 %s182, %s180
        %s184 = smul.addr %s183, 4
        %s185 = scalar_lea.vmem %s1, %s184
        %p186 = pneg %p88
        %p187 = pneg %p85
        %p188 = pneg %p118
        %p189 = pneg %p115
        %s190 = sand.u32 %s105, 1
        %s191 = scalar_lea.sflag [#allocation3], %s190
        %s192 = sand.u32 %s105, 1
        %s193 = smul.addr %s192, 4
        %s194 = scalar_lea.vmem [#allocation2], %s193
        %p195 = scmp.lt.s32.totalorder %s21, 1
        %s196 = scalar_select %p195, %s21, 1
        %p197 = scmp.lt.s32.totalorder %s22, 0
        %s198 = scalar_select %p197, %s22, 0
        %p199 = scmp.lt.s32.totalorder %s23, 0
        %s200 = scalar_select %p199, %s23, 0
        %s201 = sadd.s32 %s200, %s198
        %s202 = sadd.s32 %s201, %s196
        %s203 = smul.addr %s202, 4
        %s204 = scalar_lea.vmem %s0, %s203
        %p205 = scmp.lt.s32.totalorder %s21, 1
        %s206 = scalar_select %p205, %s21, 1
        %p207 = scmp.lt.s32.totalorder %s22, 0
        %s208 = scalar_select %p207, %s22, 0
        %s209 = sadd.s32 %s208, %s206
        %s210 = smul.addr %s209, 4
        %s211 = scalar_lea.vmem %s1, %s210
        %v212 = vld [vmem:[%s204] sm:$0xf]
        %v213 = vld [vmem:[%s211] sm:$0xf]
        %215 = vset.pattern.permute.xlu0 0
        %216 = vperm.xlu0 %215, %v213
        %v217 = vpop.permute.xlu0 %216
        %v219 = vmul.f32 %v212, %v217
        %v220 = vadd.f32 %v219, %v217
        %vm221 = vcmask 125952
        %222 = vst.msk [vmem:[%s194] sm:$0xf] %vm221, %v220
        %s223 = sand.u32 %s105, 1
        %s224 = scalar_lea.sflag [#allocation3], %s223
        %s225 = sand.u32 %s105, 1
        %s226 = smul.addr %s225, 4
        %s227 = scalar_lea.vmem [#allocation2], %s226
        // Predicated region
        $region29: #{fms_block.3} parent=27 // pred_check
          %p228 = pneg %p115
        $region30: #{fms_block.3} parent=27 // pred_check_branch
          %230 = sbr.rel (%p228) target = $region32
        $region31: #{fms_block.3} parent=27 // pred_region
          %s232 = ssub.s32 64, 64
          %233 = vsyncadd %s224, %s232
          %s234 = sadd.s32 %s23, %s22
          %s235 = sadd.s32 %s234, %s21
          %s236 = smul.addr %s235, 64
          %s237 = scalar_lea.hbm %s2, %s236
          %s239 = sshll.u32 %s227, 4
          %s240 = int_to_ptr.vmem [resolvable:$true] %s239
          %242 = dma.vmem_to_hbm [thread:$0]  %s240, 64, %s237, %s224
        $region32: #{fms_block.3} parent=27 // pred_fallthru
          _
      $region28: #{fms_block.3} parent=5 // pred_fallthru
        _
      %p243 = scmp.le.s32.totalorder 2, %s11
      // Predicated region
      $region33: #{fms_block.3} parent=5 // pred_check
        %p244 = pneg %p243
      $region34: #{fms_block.3} parent=5 // pred_check_branch
        %246 = sbr.rel (%p244) target = $region36
      $region35: #{fms_block.3} parent=5 // pred_region
        %s247 = ssub.s32 %s11, 2
        // Predicated region
        $region37: #{fms_block.3} parent=35 // pred_check
          %p248 = pneg %p121
        $region38: #{fms_block.3} parent=35 // pred_check_branch
          %250 = sbr.rel (%p248) target = $region40
        $region39: #{fms_block.3} parent=35 // pred_region
          %s251 = sand.u32 %s106, 1
          %s252 = scalar_lea.sflag [#allocation3], %s251
          %s253 = sand.u32 %s106, 1
          %s254 = smul.addr %s253, 4
          %s255 = scalar_lea.vmem [#allocation2], %s254
          %256 = dma.done %s252, 64
        $region40: #{fms_block.3} parent=35 // pred_fallthru
          _
      $region36: #{fms_block.3} parent=5 // pred_fallthru
        _
    $region6: #{fms_block.3} parent=1 // loop_footer
      %s15 = sadd.s32 1, %s11
    $region7: #{fms_block.3} parent=1 // loop_footer_branch
      %10 = sbr.rel target = $region3
    $region8: #{fms_block.3} parent=1 // loop_exit
      _
    %257 = vsyncpa [#allocation3], 1
    %s258 = scalar_lea.sflag [#allocation3], 1
    %259 = vsyncpa %s258, 1

</llo_original>
